<compile_context>
chip_gen: v6e
topology: v6e:2x2x1
jax: 0.10.0
libtpu: 0.0.40
codegen_flags: <defaults>
</compile_context>

<pallas_src>
import numpy as np
import jax
import jax.numpy as jnp
from jax.experimental import pallas as pl
from jax.experimental.pallas import tpu as pltpu

WINDOW_SIZE = 512
ADAPTIVE_FILTER = True  # args.adaptive_filter assumed True


# --------------------------------------------------------------------------- #
# Glue: DFT kernels (exactly as create_dft_kernels) and irfft bases
# --------------------------------------------------------------------------- #
def create_dft_kernels_np(n_fft, freq_bins=None, fmin=50, fmax=6000, sr=44100):
    if freq_bins is None:
        freq_bins = (n_fft - 1) // 2 + 1
    s = np.arange(n_fft)
    wsin = np.zeros((freq_bins, n_fft), dtype=np.float64)
    wcos = np.zeros((freq_bins, n_fft), dtype=np.float64)
    start_bin = fmin * n_fft / sr
    scaling_ind = (fmax - fmin) * (n_fft / sr) / freq_bins
    for k in range(freq_bins):
        freq = (k * scaling_ind + start_bin) * sr / n_fft
        wsin[k, :] = np.sin(2 * np.pi * freq * s / sr)
        wcos[k, :] = np.cos(2 * np.pi * freq * s / sr)
    return wsin.astype(np.float32), wcos.astype(np.float32)


def irfft_basis_t_np(F, N):
    """Transposed bases so that irfft(X, n=N, norm='ortho') along freq equals
    Re(X) @ icos_t + Im(X) @ isin_t with X carried as (..., F)."""
    K = N // 2 + 1
    k = np.arange(F)[:, None].astype(np.float64)   # (F, 1)
    t = np.arange(N)[None, :].astype(np.float64)   # (1, N)
    coef = np.where(k == 0, 1.0, 2.0)
    if N % 2 == 0:
        coef = np.where(k == N // 2, 1.0, coef)
    coef = np.where(k >= K, 0.0, coef)              # irfft crops extra bins
    ang = 2.0 * np.pi * k * t / N
    icos_t = coef * np.cos(ang) / np.sqrt(N)        # (F, N)
    isin_t = -coef * np.sin(ang) / np.sqrt(N)       # (F, N)
    isin_t[0, :] = 0.0                              # Im(DC) ignored by irfft
    if N % 2 == 0 and N // 2 < F:
        isin_t[N // 2, :] = 0.0                     # Im(Nyquist) ignored by irfft
    return icos_t.astype(np.float32), isin_t.astype(np.float32)


# --------------------------------------------------------------------------- #
# Pallas kernel (one program per batch element, data carried as (C, N)/(C, F))
# --------------------------------------------------------------------------- #
def _asb_kernel(x_ref, wcos_t_ref, wsin_t_ref, icos_t_ref, isin_t_ref,
                cw_ref, cwh_ref, par_ref, o_ref):
    C = x_ref.shape[1]
    N = x_ref.shape[2]
    F = wcos_t_ref.shape[1]

    less_c = par_ref[0]      # SMEM scalars
    greater_c = par_ref[1]
    thresh = par_ref[2]

    x = x_ref[0].astype(jnp.float32)                 # (C, N)

    # --- temporal background equalization (windows of 512 along time) ------- #
    if N <= WINDOW_SIZE:
        m = jnp.mean(x, axis=1, keepdims=True)                       # (C, 1)
        xe = jnp.where(x > m, x * greater_c, x * less_c)             # (C, N)
    else:
        nfull = N // WINDOW_SIZE
        xf = x[:, : nfull * WINDOW_SIZE].reshape(C, nfull, WINDOW_SIZE)
        mf = jnp.mean(xf, axis=2, keepdims=True)
        ef = jnp.where(xf > mf, xf * greater_c, xf * less_c)
        ef = ef.reshape(C, nfull * WINDOW_SIZE)
        if N % WINDOW_SIZE:
            xt = x[:, nfull * WINDOW_SIZE:]
            mt = jnp.mean(xt, axis=1, keepdims=True)
            et = jnp.where(xt > mt, xt * greater_c, xt * less_c)
            xe = jnp.concatenate([ef, et], axis=1)
        else:
            xe = ef

    xe_b = xe.astype(jnp.bfloat16)

    # --- warped DFT (trainable-kernel matmuls), carried transposed (C, F) --- #
    re = jnp.dot(xe_b, wcos_t_ref[...], preferred_element_type=jnp.float32)
    # wsin_t already carries the minus sign, so this is Im(x_fft) directly.
    im = jnp.dot(xe_b, wsin_t_ref[...], preferred_element_type=jnp.float32)

    # --- complex weighting: x_fft * view_as_complex(complex_weight) --------- #
    wr = cw_ref[:, 0:1]      # (C, 1)
    wi = cw_ref[:, 1:2]
    xw_re = re * wr - im * wi
    xw_im = re * wi + im * wr

    if ADAPTIVE_FILTER:
        # Per-frequency energy (f32), summed over channels.
        energy = jnp.sum(re * re + im * im, axis=0, keepdims=True)   # (1, F)

        # torch.median (lower median) via value bisection: O(F * iters) work,
        # no (F, F) temporaries.  k-th smallest (0-indexed), k = (F-1)//2.
        k = (F - 1) // 2

        def bisect(_, lh):
            lo, hi = lh
            mid = 0.5 * (lo + hi)
            below = jnp.sum((energy <= mid).astype(jnp.float32))
            take_hi = below >= (k + 1)
            return (jnp.where(take_hi, lo, mid), jnp.where(take_hi, mid, hi))

        lo, _ = jax.lax.fori_loop(0, 48, bisect,
                                  (jnp.float32(-1.0), jnp.max(energy)))
        # Smallest element above lo == the lower median (exact data value).
        median = jnp.min(jnp.where(energy > lo, energy, jnp.float32(3.4e38)))

        norm_e = energy / (median + 1e-6)                            # (1, F)
        mask = (norm_e > thresh).astype(jnp.float32)                 # (1, F)

        whr = cwh_ref[:, 0:1]
        whi = cwh_ref[:, 1:2]
        mre = re * mask
        mim = im * mask
        xw_re = xw_re + (mre * whr - mim * whi)
        xw_im = xw_im + (mre * whi + mim * whr)

    # --- irfft(n=N, norm='ortho') over frequency, transposed -> (C, N) ------ #
    out = (jnp.dot(xw_re.astype(jnp.bfloat16), icos_t_ref[...],
                   preferred_element_type=jnp.float32)
           + jnp.dot(xw_im.astype(jnp.bfloat16), isin_t_ref[...],
                     preferred_element_type=jnp.float32))
    o_ref[0] = out.astype(o_ref.dtype)


def adaptive_spectral_block(x_in, wsin, wcos, cw, cwh, less_c, greater_c, thresh):
    B, N, C = x_in.shape
    F = wsin.shape[0]

    # Module's leading permute(0, 2, 1): do it once here; the kernel then
    # produces the result already in the module's final (permuted) layout.
    x_t = jnp.transpose(x_in, (0, 2, 1))                      # (B, C, N)

    # bf16 bases (f32 accumulation inside the kernel); sign of wsin folded in.
    wcos_t = jnp.transpose(wcos).astype(jnp.bfloat16)         # (N, F)
    wsin_t = jnp.transpose(-wsin).astype(jnp.bfloat16)        # (N, F) == Im basis
    icos_np, isin_np = irfft_basis_t_np(F, N)                 # (F, N) each
    icos_t = jnp.asarray(icos_np, dtype=jnp.bfloat16)
    isin_t = jnp.asarray(isin_np, dtype=jnp.bfloat16)

    cw_f = cw.astype(jnp.float32)                             # (C, 2)
    cwh_f = cwh.astype(jnp.float32)                           # (C, 2)
    params = jnp.array([less_c, greater_c, thresh], dtype=jnp.float32)  # (3,)

    out = pl.pallas_call(
        _asb_kernel,
        out_shape=jax.ShapeDtypeStruct((B, C, N), x_in.dtype),
        grid_spec=pltpu.PrefetchScalarGridSpec(
            num_scalar_prefetch=0,
            grid=(B,),
            in_specs=[
                pl.BlockSpec((1, C, N), lambda b: (b, 0, 0)),   # x (per batch)
                pl.BlockSpec((N, F), lambda b: (0, 0)),         # wcos^T  (bf16)
                pl.BlockSpec((N, F), lambda b: (0, 0)),         # -wsin^T (bf16)
                pl.BlockSpec((F, N), lambda b: (0, 0)),         # irfft cos basis
                pl.BlockSpec((F, N), lambda b: (0, 0)),         # irfft sin basis
                pl.BlockSpec((C, 2), lambda b: (0, 0)),         # complex_weight
                pl.BlockSpec((C, 2), lambda b: (0, 0)),         # complex_weight_high
                pl.BlockSpec(memory_space=pltpu.MemorySpace.SMEM),  # scalars
            ],
            out_specs=pl.BlockSpec((1, C, N), lambda b: (b, 0, 0)),
        ),
        compiler_params=pltpu.CompilerParams(
            dimension_semantics=("parallel",),
            vmem_limit_bytes=32 * 1024 * 1024,
        ),
    )(x_t, wcos_t, wsin_t, icos_t, isin_t, cw_f, cwh_f, params)

    # Module tail: permute(0,2,1) -> .to(dtype) -> .view(B, N, C).
    # The kernel output is already (B, C, N), so only a reshape remains.
    return out.reshape(B, N, C)


# --------------------------------------------------------------------------- #
# Pure-JAX reference (models the torch module, f32 / HIGHEST precision)
# --------------------------------------------------------------------------- #
def reference_forward(x_in, wsin, wcos, cw, cwh, less_c, greater_c, thresh):
    B, N, C = x_in.shape
    F = wsin.shape[0]
    hp = jax.lax.Precision.HIGHEST
    x = x_in.astype(jnp.float32)
    xt = jnp.transpose(x, (0, 2, 1))                       # (B, C, N)
    segs = []
    for i in range(0, N, WINDOW_SIZE):
        w = xt[:, :, i:i + WINDOW_SIZE]
        m = jnp.mean(w, axis=2, keepdims=True)
        segs.append(jnp.where(w > m, w * greater_c, w * less_c))
    xe = segs[0] if len(segs) == 1 else jnp.concatenate(segs, axis=2)

    spec_imag = jnp.einsum('bcn,fn->bcf', xe, wsin, precision=hp)
    spec_real = jnp.einsum('bcn,fn->bcf', xe, wcos, precision=hp)
    xf = (jnp.transpose(spec_real, (0, 2, 1))
          - 1j * jnp.transpose(spec_imag, (0, 2, 1))).astype(jnp.complex64)  # (B,F,C)

    w = cw[:, 0] + 1j * cw[:, 1]
    xw = xf * w
    energy = jnp.sum(jnp.abs(xf) ** 2, axis=-1)            # (B, F)
    med = jnp.sort(energy, axis=1)[:, (F - 1) // 2][:, None]
    norm_e = energy / (med + 1e-6)
    if ADAPTIVE_FILTER:
        mask = (norm_e > thresh).astype(jnp.float32)[..., None]
        wh = cwh[:, 0] + 1j * cwh[:, 1]
        xw = xw + (xf * mask) * wh

    K = N // 2 + 1
    if F < K:
        xw = jnp.pad(xw, ((0, 0), (0, K - F), (0, 0)))
    else:
        xw = xw[:, :K, :]
    # irfft ignores Im of DC / Nyquist bins (pocketfft c2r semantics)
    xw = xw.at[:, 0, :].set(xw[:, 0, :].real.astype(jnp.complex64))
    if N % 2 == 0:
        xw = xw.at[:, -1, :].set(xw[:, -1, :].real.astype(jnp.complex64))
    y = jnp.fft.irfft(xw, n=N, axis=1, norm='ortho')        # (B, N, C)
    y = jnp.transpose(y, (0, 2, 1)).astype(x_in.dtype).reshape(B, N, C)
    return y, norm_e


# --------------------------------------------------------------------------- #
if __name__ == "__main__":
    B, N, C = 2, 16, 4          # x_in: (batch, seq, dim); module dim == C
    key = jax.random.PRNGKey(0)
    kx, kw1, kw2, kl, kg = jax.random.split(key, 5)

    x_in = jax.random.normal(kx, (B, N, C), dtype=jnp.float32)

    # Deterministic parameter init mirroring __init__ shapes
    cw = (jax.random.truncated_normal(kw1, -2.0, 2.0, (C, 2)) * 0.02).astype(jnp.float32)
    cwh = (jax.random.truncated_normal(kw2, -2.0, 2.0, (C, 2)) * 0.02).astype(jnp.float32)
    less_c = float(jax.random.uniform(kl, ()))
    greater_c = float(jax.random.uniform(kg, ())) + 1.0

    F = (N - 1) // 2 + 1
    wsin_np, wcos_np = create_dft_kernels_np(N, None, fmin=50, fmax=5000, sr=16000)
    wsin, wcos = jnp.asarray(wsin_np), jnp.asarray(wcos_np)

    # Pick the (free) threshold parameter in (0,1) with the largest margin to
    # every normalized energy, so bf16 rounding inside the kernel cannot flip
    # the adaptive mask in the check.
    _, norm_e = reference_forward(x_in, wsin, wcos, cw, cwh, less_c, greater_c, 0.5)
    ne = np.asarray(norm_e).ravel()
    cands = np.linspace(0.02, 0.98, 241)
    dists = np.min(np.abs(cands[:, None] - ne[None, :]), axis=1)
    thresh = float(cands[int(np.argmax(dists))])

    y_ref, _ = reference_forward(x_in, wsin, wcos, cw, cwh, less_c, greater_c, thresh)
    y = adaptive_spectral_block(x_in, wsin, wcos, cw, cwh, less_c, greater_c, thresh)
    jax.block_until_ready(y)

    np.testing.assert_allclose(np.asarray(y), np.asarray(y_ref), rtol=3e-2, atol=3e-2)
    print("KERNEL_OK")
</pallas_src>

<mosaic_0001>
module attributes {stable_mosaic.version = 11 : i64} {
  func.func @_asb_kernel(%arg0: i32, %arg1: memref<1x4x16xf32, #tpu.memory_space<vmem>>, %arg2: memref<16x8xbf16, #tpu.memory_space<vmem>>, %arg3: memref<16x8xbf16, #tpu.memory_space<vmem>>, %arg4: memref<8x16xbf16, #tpu.memory_space<vmem>>, %arg5: memref<8x16xbf16, #tpu.memory_space<vmem>>, %arg6: memref<4x2xf32, #tpu.memory_space<vmem>>, %arg7: memref<4x2xf32, #tpu.memory_space<vmem>>, %arg8: memref<3xf32, #tpu.memory_space<smem>>, %arg9: memref<1x4x16xf32, #tpu.memory_space<vmem>>) attributes {dimension_semantics = [#tpu.dimension_semantics<parallel>], iteration_bounds = array<i64: 2>, scalar_prefetch = 0 : i64, scratch_operands = 0 : i64, tpu.core_type = #tpu.core_type<tc>, window_params = [{transform_indices = @transform_0, window_bounds = array<i64: 1, 4, 16>}, {pipeline_mode = #tpu.pipeline_mode<synchronous>, transform_indices = @transform_1, window_bounds = array<i64: 16, 8>}, {pipeline_mode = #tpu.pipeline_mode<synchronous>, transform_indices = @transform_2, window_bounds = array<i64: 16, 8>}, {pipeline_mode = #tpu.pipeline_mode<synchronous>, transform_indices = @transform_3, window_bounds = array<i64: 8, 16>}, {pipeline_mode = #tpu.pipeline_mode<synchronous>, transform_indices = @transform_4, window_bounds = array<i64: 8, 16>}, {pipeline_mode = #tpu.pipeline_mode<synchronous>, transform_indices = @transform_5, window_bounds = array<i64: 4, 2>}, {pipeline_mode = #tpu.pipeline_mode<synchronous>, transform_indices = @transform_6, window_bounds = array<i64: 4, 2>}, {transform_indices = @transform_7, window_bounds = array<i64: 3>}, {transform_indices = @transform_8, window_bounds = array<i64: 1, 4, 16>}]} {
    %c0 = arith.constant 0 : index
    %0 = memref.load %arg8[%c0] : memref<3xf32, #tpu.memory_space<smem>>
    %c1 = arith.constant 1 : index
    %1 = memref.load %arg8[%c1] : memref<3xf32, #tpu.memory_space<smem>>
    %c2 = arith.constant 2 : index
    %2 = memref.load %arg8[%c2] : memref<3xf32, #tpu.memory_space<smem>>
    %c0_0 = arith.constant 0 : index
    %c0_1 = arith.constant 0 : index
    %c0_2 = arith.constant 0 : index
    %3 = vector.load %arg1[%c0_0, %c0_1, %c0_2] : memref<1x4x16xf32, #tpu.memory_space<vmem>>, vector<1x4x16xf32>
    %4 = vector.shape_cast %3 : vector<1x4x16xf32> to vector<4x16xf32>
    %cst = arith.constant dense<0.000000e+00> : vector<4xf32>
    %5 = vector.multi_reduction <add>, %4, %cst [1] : vector<4x16xf32> to vector<4xf32>
    %6 = vector.shape_cast %5 : vector<4xf32> to vector<4x1xf32>
    %cst_3 = arith.constant 1.600000e+01 : f32
    %7 = vector.broadcast %cst_3 : f32 to vector<4x1xf32>
    %8 = arith.divf %6, %7 : vector<4x1xf32>
    %9 = vector.broadcast %8 : vector<4x1xf32> to vector<4x16xf32>
    %10 = arith.cmpf ogt, %4, %9 : vector<4x16xf32>
    %11 = vector.broadcast %1 : f32 to vector<4x16xf32>
    %12 = arith.mulf %4, %11 : vector<4x16xf32>
    %13 = vector.broadcast %0 : f32 to vector<4x16xf32>
    %14 = arith.mulf %4, %13 : vector<4x16xf32>
    %15 = arith.select %10, %12, %14 : vector<4x16xi1>, vector<4x16xf32>
    %16 = arith.truncf %15 : vector<4x16xf32> to vector<4x16xbf16>
    %c0_4 = arith.constant 0 : index
    %c0_5 = arith.constant 0 : index
    %17 = vector.load %arg2[%c0_4, %c0_5] : memref<16x8xbf16, #tpu.memory_space<vmem>>, vector<16x8xbf16>
    %cst_6 = arith.constant dense<0.000000e+00> : vector<4x8xf32>
    %18 = tpu.matmul %16, %17, %cst_6 {dimension_numbers = #tpu.dot_dimension_numbers<[1], [0], [0], [1], [0, 0, 1, 1], [], []>} : vector<4x16xbf16>, vector<16x8xbf16>, vector<4x8xf32> -> vector<4x8xf32>
    %c0_7 = arith.constant 0 : index
    %c0_8 = arith.constant 0 : index
    %19 = vector.load %arg3[%c0_7, %c0_8] : memref<16x8xbf16, #tpu.memory_space<vmem>>, vector<16x8xbf16>
    %cst_9 = arith.constant dense<0.000000e+00> : vector<4x8xf32>
    %20 = tpu.matmul %16, %19, %cst_9 {dimension_numbers = #tpu.dot_dimension_numbers<[1], [0], [0], [1], [0, 0, 1, 1], [], []>} : vector<4x16xbf16>, vector<16x8xbf16>, vector<4x8xf32> -> vector<4x8xf32>
    %c0_10 = arith.constant 0 : index
    %c0_11 = arith.constant 0 : index
    %21 = vector.load %arg6[%c0_10, %c0_11] : memref<4x2xf32, #tpu.memory_space<vmem>>, vector<4x1xf32>
    %c0_12 = arith.constant 0 : index
    %c1_13 = arith.constant 1 : index
    %22 = vector.load %arg6[%c0_12, %c1_13] : memref<4x2xf32, #tpu.memory_space<vmem>>, vector<4x1xf32>
    %23 = vector.broadcast %21 : vector<4x1xf32> to vector<4x8xf32>
    %24 = arith.mulf %18, %23 : vector<4x8xf32>
    %25 = vector.broadcast %22 : vector<4x1xf32> to vector<4x8xf32>
    %26 = arith.mulf %20, %25 : vector<4x8xf32>
    %27 = arith.subf %24, %26 : vector<4x8xf32>
    %28 = vector.broadcast %22 : vector<4x1xf32> to vector<4x8xf32>
    %29 = arith.mulf %18, %28 : vector<4x8xf32>
    %30 = vector.broadcast %21 : vector<4x1xf32> to vector<4x8xf32>
    %31 = arith.mulf %20, %30 : vector<4x8xf32>
    %32 = arith.addf %29, %31 : vector<4x8xf32>
    %33 = arith.mulf %18, %18 : vector<4x8xf32>
    %34 = arith.mulf %20, %20 : vector<4x8xf32>
    %35 = arith.addf %33, %34 : vector<4x8xf32>
    %cst_14 = arith.constant dense<0.000000e+00> : vector<8xf32>
    %36 = vector.multi_reduction <add>, %35, %cst_14 [0] : vector<4x8xf32> to vector<8xf32>
    %37 = vector.shape_cast %36 : vector<8xf32> to vector<1x8xf32>
    %38 = vector.shape_cast %37 : vector<1x8xf32> to vector<1x1x8xf32>
    %cst_15 = arith.constant dense<0xFF800000> : vector<1xf32>
    %39 = vector.multi_reduction <maximumf>, %38, %cst_15 [1, 2] : vector<1x1x8xf32> to vector<1xf32>
    %40 = vector.shape_cast %39 : vector<1xf32> to vector<1x1x1xf32>
    %41 = vector.extract %40[0, 0, 0] : f32 from vector<1x1x1xf32>
    %cst_16 = arith.constant -1.000000e+00 : f32
    %c0_i32 = arith.constant 0 : i32
    %c48_i32 = arith.constant 48 : i32
    %42 = arith.addi %c0_i32, %c48_i32 : i32
    %c1_i32 = arith.constant 1 : i32
    %43:2 = scf.for %arg10 = %c0_i32 to %42 step %c1_i32 iter_args(%arg11 = %cst_16, %arg12 = %41) -> (f32, f32)  : i32 {
      %87 = arith.addf %arg11, %arg12 : f32
      %cst_33 = arith.constant 5.000000e-01 : f32
      %88 = arith.mulf %cst_33, %87 : f32
      %89 = vector.broadcast %88 : f32 to vector<1x8xf32>
      %90 = arith.cmpf ole, %37, %89 : vector<1x8xf32>
      %91 = arith.extui %90 : vector<1x8xi1> to vector<1x8xi32>
      %92 = arith.sitofp %91 : vector<1x8xi32> to vector<1x8xf32>
      %93 = vector.shape_cast %92 : vector<1x8xf32> to vector<1x1x8xf32>
      %cst_34 = arith.constant dense<0.000000e+00> : vector<1xf32>
      %94 = vector.multi_reduction <add>, %93, %cst_34 [1, 2] : vector<1x1x8xf32> to vector<1xf32>
      %95 = vector.shape_cast %94 : vector<1xf32> to vector<1x1x1xf32>
      %96 = vector.extract %95[0, 0, 0] : f32 from vector<1x1x1xf32>
      %cst_35 = arith.constant 4.000000e+00 : f32
      %97 = arith.cmpf oge, %96, %cst_35 : f32
      %98 = arith.select %97, %arg11, %88 : f32
      %99 = arith.select %97, %88, %arg12 : f32
      scf.yield %98, %99 : f32, f32
    }
    %44 = vector.broadcast %43#0 : f32 to vector<1x8xf32>
    %45 = arith.cmpf ogt, %37, %44 : vector<1x8xf32>
    %cst_17 = arith.constant 3.400000e+38 : f32
    %46 = vector.broadcast %cst_17 : f32 to vector<1x8xf32>
    %47 = arith.select %45, %37, %46 : vector<1x8xi1>, vector<1x8xf32>
    %48 = vector.shape_cast %47 : vector<1x8xf32> to vector<1x1x8xf32>
    %cst_18 = arith.constant dense<0x7F800000> : vector<1xf32>
    %49 = vector.multi_reduction <minimumf>, %48, %cst_18 [1, 2] : vector<1x1x8xf32> to vector<1xf32>
    %50 = vector.shape_cast %49 : vector<1xf32> to vector<1x1x1xf32>
    %51 = vector.extract %50[0, 0, 0] : f32 from vector<1x1x1xf32>
    %cst_19 = arith.constant 9.99999997E-7 : f32
    %52 = arith.addf %51, %cst_19 : f32
    %53 = vector.broadcast %52 : f32 to vector<1x8xf32>
    %54 = arith.divf %37, %53 : vector<1x8xf32>
    %55 = vector.broadcast %2 : f32 to vector<1x8xf32>
    %56 = arith.cmpf ogt, %54, %55 : vector<1x8xf32>
    %57 = arith.extui %56 : vector<1x8xi1> to vector<1x8xi32>
    %58 = arith.sitofp %57 : vector<1x8xi32> to vector<1x8xf32>
    %c0_20 = arith.constant 0 : index
    %c0_21 = arith.constant 0 : index
    %59 = vector.load %arg7[%c0_20, %c0_21] : memref<4x2xf32, #tpu.memory_space<vmem>>, vector<4x1xf32>
    %c0_22 = arith.constant 0 : index
    %c1_23 = arith.constant 1 : index
    %60 = vector.load %arg7[%c0_22, %c1_23] : memref<4x2xf32, #tpu.memory_space<vmem>>, vector<4x1xf32>
    %61 = vector.broadcast %58 : vector<1x8xf32> to vector<4x8xf32>
    %62 = arith.mulf %18, %61 : vector<4x8xf32>
    %63 = vector.broadcast %58 : vector<1x8xf32> to vector<4x8xf32>
    %64 = arith.mulf %20, %63 : vector<4x8xf32>
    %65 = vector.broadcast %59 : vector<4x1xf32> to vector<4x8xf32>
    %66 = arith.mulf %62, %65 : vector<4x8xf32>
    %67 = vector.broadcast %60 : vector<4x1xf32> to vector<4x8xf32>
    %68 = arith.mulf %64, %67 : vector<4x8xf32>
    %69 = arith.subf %66, %68 : vector<4x8xf32>
    %70 = arith.addf %27, %69 : vector<4x8xf32>
    %71 = vector.broadcast %60 : vector<4x1xf32> to vector<4x8xf32>
    %72 = arith.mulf %62, %71 : vector<4x8xf32>
    %73 = vector.broadcast %59 : vector<4x1xf32> to vector<4x8xf32>
    %74 = arith.mulf %64, %73 : vector<4x8xf32>
    %75 = arith.addf %72, %74 : vector<4x8xf32>
    %76 = arith.addf %32, %75 : vector<4x8xf32>
    %77 = arith.truncf %70 : vector<4x8xf32> to vector<4x8xbf16>
    %c0_24 = arith.constant 0 : index
    %c0_25 = arith.constant 0 : index
    %78 = vector.load %arg4[%c0_24, %c0_25] : memref<8x16xbf16, #tpu.memory_space<vmem>>, vector<8x16xbf16>
    %cst_26 = arith.constant dense<0.000000e+00> : vector<4x16xf32>
    %79 = tpu.matmul %77, %78, %cst_26 {dimension_numbers = #tpu.dot_dimension_numbers<[1], [0], [0], [1], [0, 0, 1, 1], [], []>} : vector<4x8xbf16>, vector<8x16xbf16>, vector<4x16xf32> -> vector<4x16xf32>
    %80 = arith.truncf %76 : vector<4x8xf32> to vector<4x8xbf16>
    %c0_27 = arith.constant 0 : index
    %c0_28 = arith.constant 0 : index
    %81 = vector.load %arg5[%c0_27, %c0_28] : memref<8x16xbf16, #tpu.memory_space<vmem>>, vector<8x16xbf16>
    %cst_29 = arith.constant dense<0.000000e+00> : vector<4x16xf32>
    %82 = tpu.matmul %80, %81, %cst_29 {dimension_numbers = #tpu.dot_dimension_numbers<[1], [0], [0], [1], [0, 0, 1, 1], [], []>} : vector<4x8xbf16>, vector<8x16xbf16>, vector<4x16xf32> -> vector<4x16xf32>
    %83 = arith.addf %79, %82 : vector<4x16xf32>
    %c0_30 = arith.constant 0 : index
    %c0_31 = arith.constant 0 : index
    %c0_32 = arith.constant 0 : index
    %84 = vector.load %arg9[%c0_30, %c0_31, %c0_32] : memref<1x4x16xf32, #tpu.memory_space<vmem>>, vector<1x4x16xf32>
    %85 = vector.shape_cast %84 : vector<1x4x16xf32> to vector<4x16xf32>
    %86 = vector.shape_cast %83 : vector<4x16xf32> to vector<1x4x16xf32>
    tpu.vector_store %arg9[%c0_30, %c0_31, %c0_32], %86 {strides = array<i32>} : memref<1x4x16xf32, #tpu.memory_space<vmem>>, vector<1x4x16xf32>,
    return
  }
  func.func @transform_0(%arg0: i32) -> (i32, i32, i32) {
    %c0_i32 = arith.constant 0 : i32
    %c0_i32_0 = arith.constant 0 : i32
    %c0_i32_1 = arith.constant 0 : i32
    return %arg0, %c0_i32, %c0_i32_0 : i32, i32, i32
  }
  func.func @transform_1(%arg0: i32) -> (i32, i32) {
    %c0_i32 = arith.constant 0 : i32
    %c0_i32_0 = arith.constant 0 : i32
    %c0_i32_1 = arith.constant 0 : i32
    return %c0_i32, %c0_i32_0 : i32, i32
  }
  func.func @transform_2(%arg0: i32) -> (i32, i32) {
    %c0_i32 = arith.constant 0 : i32
    %c0_i32_0 = arith.constant 0 : i32
    %c0_i32_1 = arith.constant 0 : i32
    return %c0_i32, %c0_i32_0 : i32, i32
  }
  func.func @transform_3(%arg0: i32) -> (i32, i32) {
    %c0_i32 = arith.constant 0 : i32
    %c0_i32_0 = arith.constant 0 : i32
    %c0_i32_1 = arith.constant 0 : i32
    return %c0_i32, %c0_i32_0 : i32, i32
  }
  func.func @transform_4(%arg0: i32) -> (i32, i32) {
    %c0_i32 = arith.constant 0 : i32
    %c0_i32_0 = arith.constant 0 : i32
    %c0_i32_1 = arith.constant 0 : i32
    return %c0_i32, %c0_i32_0 : i32, i32
  }
  func.func @transform_5(%arg0: i32) -> (i32, i32) {
    %c0_i32 = arith.constant 0 : i32
    %c0_i32_0 = arith.constant 0 : i32
    %c0_i32_1 = arith.constant 0 : i32
    return %c0_i32, %c0_i32_0 : i32, i32
  }
  func.func @transform_6(%arg0: i32) -> (i32, i32) {
    %c0_i32 = arith.constant 0 : i32
    %c0_i32_0 = arith.constant 0 : i32
    %c0_i32_1 = arith.constant 0 : i32
    return %c0_i32, %c0_i32_0 : i32, i32
  }
  func.func @transform_7(%arg0: i32) -> i32 {
    %c0_i32 = arith.constant 0 : i32
    %c0_i32_0 = arith.constant 0 : i32
    return %c0_i32 : i32
  }
  func.func @transform_8(%arg0: i32) -> (i32, i32, i32) {
    %c0_i32 = arith.constant 0 : i32
    %c0_i32_0 = arith.constant 0 : i32
    %c0_i32_1 = arith.constant 0 : i32
    return %arg0, %c0_i32, %c0_i32_0 : i32, i32, i32
  }
}

</mosaic_0001>

<llo_original>
// kernel: tpu_custom_call.1
$region0: #{tpu_custom_call.1}
  #allocation0 [shape = 'u32[]', space=smem, size = 0x4, offset = 0x4, fixed_abs, tag = 'smem constant byte address 0x4 - core index']
  #allocation1 [shape = 'u32[144,128]{1,0:T(1,128)}', space=vmem, size = 0x12000, scoped, tag = 'internal scratch']
  %s0 = inlined_call_operand.vmem [shape: f32[2,4,16], index: 0, kind: input, shape index: {}]
  %s1 = inlined_call_operand.vmem [shape: bf16[16,8], index: 1, kind: input, shape index: {}]
  %s2 = inlined_call_operand.vmem [shape: bf16[16,8], index: 2, kind: input, shape index: {}]
  %s3 = inlined_call_operand.vmem [shape: bf16[8,16], index: 3, kind: input, shape index: {}]
  %s4 = inlined_call_operand.vmem [shape: bf16[8,16], index: 4, kind: input, shape index: {}]
  %s5 = inlined_call_operand.vmem [shape: f32[4,2], index: 5, kind: input, shape index: {}]
  %s6 = inlined_call_operand.vmem [shape: f32[4,2], index: 6, kind: input, shape index: {}]
  %s7 = inlined_call_operand.vmem [shape: f32[3], index: 7, kind: input, shape index: {}]
  %s8 = inlined_call_operand.hbm [shape: f32[2,4,16], index: 8, kind: output, shape index: {}]
  %s9 = sld [smem:[#allocation0]]
  $region76: #{tpu_custom_call.1} parent=0
    _
  %s11 = ssub.s32 1, %s9
  %s12 = scalar_select 0, %s11, %s9
  $region1: #{tpu_custom_call.1} parent=0
    #allocation2 [shape = 'u8[512]{0}', space=smem, size = 0x200, scoped, tag = 'input window, operand 7, single buffered']
    #allocation3 [shape = 's32[2]{0}', space=sflag, size = 0x8, scoped, tag = 'scoped memory for tpu_custom_call.1']
    #allocation4 [shape = 's32[2]{0}', space=sflag, size = 0x8, scoped, tag = 'scoped memory for tpu_custom_call.1']
    #allocation5 [shape = 'u8[4096]{0}', space=vmem, size = 0x1000, scoped, tag = 'output window, operand 0']
    %13 = vsyncpa [#allocation4], 0
    %14 = vsyncpa [#allocation3], 0
    %s15 = scalar_lea.sflag [#allocation3], 1
    %16 = vsyncpa %s15, 0
    loop: start=0, step=1, limit=4
    $region2: #{tpu_custom_call.1} parent=1 // loop_pre_header
      _
    $region3: #{tpu_custom_call.1} parent=1 // loop_header
      %s18 = sphi 0, %s22
      %p19 = scmp.ge.s32.totalorder %s18, 4
      %s28 = sphi 0, %s30
      %s31 = sphi 0, %s28
      %s32 = sphi 0, %s31
      %s48 = sphi 0, %s32
      %s52 = sphi 0, %s52
      %s54 = sphi 0, %s52
      %s55 = sphi 0, %s54
      %s69 = sphi 0, %s55
      %s73 = sphi 0, %s73
      %s75 = sphi 0, %s73
      %s76 = sphi 0, %s75
      %s90 = sphi 0, %s76
      %s94 = sphi 0, %s94
      %s96 = sphi 0, %s94
      %s97 = sphi 0, %s96
      %s111 = sphi 0, %s97
      %s115 = sphi 0, %s115
      %s117 = sphi 0, %s115
      %s118 = sphi 0, %s117
      %s132 = sphi 0, %s118
      %s136 = sphi 0, %s136
      %s138 = sphi 0, %s136
      %s139 = sphi 0, %s138
      %s153 = sphi 0, %s139
      %s157 = sphi 0, %s157
      %s159 = sphi 0, %s157
      %s160 = sphi 0, %s159
      %s174 = sphi 0, %s160
      %s178 = sphi 0, %s178
      %s180 = sphi 0, %s178
      %s181 = sphi 0, %s180
      %s195 = sphi 0, %s181
      %s201 = sphi 0, %s203
      %s204 = sphi 0, %s201
      %s205 = sphi 0, %s204
      %s221 = sphi 0, %s205
    $region4: #{tpu_custom_call.1} parent=1 // loop_header_branch
      %21 = sbr.rel (%p19) target = $region8
    $region5: #{tpu_custom_call.1} parent=1 // loop_body
      %s23 = ssub.s32 %s18, 1
      %s24 = ssub.s32 %s18, 2
      %s25 = sadd.s32 %s18, 1
      %s26 = ssub.s32 %s18, %s25
      %p27 = scmp.eq.s32.totalorder %s26, 0
      %s29 = sadd.s32 %s28, 1
      %s30 = scalar_select %p27, %s28, %s29
      %p33 = pneg %p27
      %p34 = scmp.eq.s32.totalorder %s18, 1
      %p35 = por %p33, %p34
      %p36 = scmp.ne.s32.totalorder %s28, %s31
      %p37 = scmp.eq.s32.totalorder %s18, 0
      %p38 = por %p36, %p37
      %p39 = scmp.ne.s32.totalorder %s28, %s31
      %p40 = scmp.eq.s32.totalorder %s23, 1
      %p41 = por %p39, %p40
      %p42 = scmp.ne.s32.totalorder %s31, %s32
      %p43 = scmp.eq.s32.totalorder %s23, 0
      %p44 = por %p42, %p43
      %p45 = scmp.ne.s32.totalorder %s31, %s32
      %p46 = scmp.eq.s32.totalorder %s24, 1
      %p47 = por %p45, %p46
      %p49 = scmp.ne.s32.totalorder %s32, %s48
      %p50 = scmp.eq.s32.totalorder %s24, 0
      %p51 = por %p49, %p50
      %s53 = sadd.s32 %s52, 1
      %p56 = scmp.eq.s32.totalorder %s18, 1
      %p57 = scmp.ne.s32.totalorder %s52, %s54
      %p58 = scmp.eq.s32.totalorder %s18, 0
      %p59 = por %p57, %p58
      %p60 = scmp.ne.s32.totalorder %s52, %s54
      %p61 = scmp.eq.s32.totalorder %s23, 1
      %p62 = por %p60, %p61
      %p63 = scmp.ne.s32.totalorder %s54, %s55
      %p64 = scmp.eq.s32.totalorder %s23, 0
      %p65 = por %p63, %p64
      %p66 = scmp.ne.s32.totalorder %s54, %s55
      %p67 = scmp.eq.s32.totalorder %s24, 1
      %p68 = por %p66, %p67
      %p70 = scmp.ne.s32.totalorder %s55, %s69
      %p71 = scmp.eq.s32.totalorder %s24, 0
      %p72 = por %p70, %p71
      %s74 = sadd.s32 %s73, 1
      %p77 = scmp.eq.s32.totalorder %s18, 1
      %p78 = scmp.ne.s32.totalorder %s73, %s75
      %p79 = scmp.eq.s32.totalorder %s18, 0
      %p80 = por %p78, %p79
      %p81 = scmp.ne.s32.totalorder %s73, %s75
      %p82 = scmp.eq.s32.totalorder %s23, 1
      %p83 = por %p81, %p82
      %p84 = scmp.ne.s32.totalorder %s75, %s76
      %p85 = scmp.eq.s32.totalorder %s23, 0
      %p86 = por %p84, %p85
      %p87 = scmp.ne.s32.totalorder %s75, %s76
      %p88 = scmp.eq.s32.totalorder %s24, 1
      %p89 = por %p87, %p88
      %p91 = scmp.ne.s32.totalorder %s76, %s90
      %p92 = scmp.eq.s32.totalorder %s24, 0
      %p93 = por %p91, %p92
      %s95 = sadd.s32 %s94, 1
      %p98 = scmp.eq.s32.totalorder %s18, 1
      %p99 = scmp.ne.s32.totalorder %s94, %s96
      %p100 = scmp.eq.s32.totalorder %s18, 0
      %p101 = por %p99, %p100
      %p102 = scmp.ne.s32.totalorder %s94, %s96
      %p103 = scmp.eq.s32.totalorder %s23, 1
      %p104 = por %p102, %p103
      %p105 = scmp.ne.s32.totalorder %s96, %s97
      %p106 = scmp.eq.s32.totalorder %s23, 0
      %p107 = por %p105, %p106
      %p108 = scmp.ne.s32.totalorder %s96, %s97
      %p109 = scmp.eq.s32.totalorder %s24, 1
      %p110 = por %p108, %p109
      %p112 = scmp.ne.s32.totalorder %s97, %s111
      %p113 = scmp.eq.s32.totalorder %s24, 0
      %p114 = por %p112, %p113
      %s116 = sadd.s32 %s115, 1
      %p119 = scmp.eq.s32.totalorder %s18, 1
      %p120 = scmp.ne.s32.totalorder %s115, %s117
      %p121 = scmp.eq.s32.totalorder %s18, 0
      %p122 = por %p120, %p121
      %p123 = scmp.ne.s32.totalorder %s115, %s117
      %p124 = scmp.eq.s32.totalorder %s23, 1
      %p125 = por %p123, %p124
      %p126 = scmp.ne.s32.totalorder %s117, %s118
      %p127 = scmp.eq.s32.totalorder %s23, 0
      %p128 = por %p126, %p127
      %p129 = scmp.ne.s32.totalorder %s117, %s118
      %p130 = scmp.eq.s32.totalorder %s24, 1
      %p131 = por %p129, %p130
      %p133 = scmp.ne.s32.totalorder %s118, %s132
      %p134 = scmp.eq.s32.totalorder %s24, 0
      %p135 = por %p133, %p134
      %s137 = sadd.s32 %s136, 1
      %p140 = scmp.eq.s32.totalorder %s18, 1
      %p141 = scmp.ne.s32.totalorder %s136, %s138
      %p142 = scmp.eq.s32.totalorder %s18, 0
      %p143 = por %p141, %p142
      %p144 = scmp.ne.s32.totalorder %s136, %s138
      %p145 = scmp.eq.s32.totalorder %s23, 1
      %p146 = por %p144, %p145
      %p147 = scmp.ne.s32.totalorder %s138, %s139
      %p148 = scmp.eq.s32.totalorder %s23, 0
      %p149 = por %p147, %p148
      %p150 = scmp.ne.s32.totalorder %s138, %s139
      %p151 = scmp.eq.s32.totalorder %s24, 1
      %p152 = por %p150, %p151
      %p154 = scmp.ne.s32.totalorder %s139, %s153
      %p155 = scmp.eq.s32.totalorder %s24, 0
      %p156 = por %p154, %p155
      %s158 = sadd.s32 %s157, 1
      %p161 = scmp.eq.s32.totalorder %s18, 1
      %p162 = scmp.ne.s32.totalorder %s157, %s159
      %p163 = scmp.eq.s32.totalorder %s18, 0
      %p164 = por %p162, %p163
      %p165 = scmp.ne.s32.totalorder %s157, %s159
      %p166 = scmp.eq.s32.totalorder %s23, 1
      %p167 = por %p165, %p166
      %p168 = scmp.ne.s32.totalorder %s159, %s160
      %p169 = scmp.eq.s32.totalorder %s23, 0
      %p170 = por %p168, %p169
      %p171 = scmp.ne.s32.totalorder %s159, %s160
      %p172 = scmp.eq.s32.totalorder %s24, 1
      %p173 = por %p171, %p172
      %p175 = scmp.ne.s32.totalorder %s160, %s174
      %p176 = scmp.eq.s32.totalorder %s24, 0
      %p177 = por %p175, %p176
      %s179 = sadd.s32 %s178, 1
      %p182 = scmp.eq.s32.totalorder %s18, 1
      %p183 = scmp.ne.s32.totalorder %s178, %s180
      %p184 = scmp.eq.s32.totalorder %s18, 0
      %p185 = por %p183, %p184
      %p186 = scmp.ne.s32.totalorder %s178, %s180
      %p187 = scmp.eq.s32.totalorder %s23, 1
      %p188 = por %p186, %p187
      %p189 = scmp.ne.s32.totalorder %s180, %s181
      %p190 = scmp.eq.s32.totalorder %s23, 0
      %p191 = por %p189, %p190
      %p192 = scmp.ne.s32.totalorder %s180, %s181
      %p193 = scmp.eq.s32.totalorder %s24, 1
      %p194 = por %p192, %p193
      %p196 = scmp.ne.s32.totalorder %s181, %s195
      %p197 = scmp.eq.s32.totalorder %s24, 0
      %p198 = por %p196, %p197
      %s199 = ssub.s32 %s18, %s25
      %p200 = scmp.eq.s32.totalorder %s199, 0
      %s202 = sadd.s32 %s201, 1
      %s203 = scalar_select %p200, %s201, %s202
      %p206 = pneg %p200
      %p207 = scmp.eq.s32.totalorder %s18, 1
      %p208 = por %p206, %p207
      %p209 = scmp.ne.s32.totalorder %s201, %s204
      %p210 = scmp.eq.s32.totalorder %s18, 0
      %p211 = por %p209, %p210
      %p212 = scmp.ne.s32.totalorder %s201, %s204
      %p213 = scmp.eq.s32.totalorder %s23, 1
      %p214 = por %p212, %p213
      %p215 = scmp.ne.s32.totalorder %s204, %s205
      %p216 = scmp.eq.s32.totalorder %s23, 0
      %p217 = por %p215, %p216
      %p218 = scmp.ne.s32.totalorder %s204, %s205
      %p219 = scmp.eq.s32.totalorder %s24, 1
      %p220 = por %p218, %p219
      %p222 = scmp.ne.s32.totalorder %s205, %s221
      %p223 = scmp.eq.s32.totalorder %s24, 0
      %p224 = por %p222, %p223
      %p225 = scmp.le.s32.totalorder 1, %s18
      %p226 = scmp.lt.s32.totalorder %s18, 3
      %p227 = pnand %p225, %p226
      %p228 = pneg %p227
      // Predicated region
      $region9: #{tpu_custom_call.1} parent=5 // pred_check
        _
      $region10: #{tpu_custom_call.1} parent=5 // pred_check_branch
        %230 = sbr.rel (%p227) target = $region12
      $region11: #{tpu_custom_call.1} parent=5 // pred_region
        %s231 = ssub.s32 %s18, 1
        // Predicated region
        $region13: #{tpu_custom_call.1} parent=11 // pred_check
          %p232 = pneg %p65
        $region14: #{tpu_custom_call.1} parent=11 // pred_check_branch
          %234 = sbr.rel (%p232) target = $region16
        $region15: #{tpu_custom_call.1} parent=11 // pred_region
          _
        $region16: #{tpu_custom_call.1} parent=11 // pred_fallthru
          _
        // Predicated region
        $region17: #{tpu_custom_call.1} parent=11 // pred_check
          %p235 = pneg %p86
        $region18: #{tpu_custom_call.1} parent=11 // pred_check_branch
          %237 = sbr.rel (%p235) target = $region20
        $region19: #{tpu_custom_call.1} parent=11 // pred_region
          _
        $region20: #{tpu_custom_call.1} parent=11 // pred_fallthru
          _
        // Predicated region
        $region21: #{tpu_custom_call.1} parent=11 // pred_check
          %p238 = pneg %p107
        $region22: #{tpu_custom_call.1} parent=11 // pred_check_branch
          %240 = sbr.rel (%p238) target = $region24
        $region23: #{tpu_custom_call.1} parent=11 // pred_region
          _
        $region24: #{tpu_custom_call.1} parent=11 // pred_fallthru
          _
        // Predicated region
        $region25: #{tpu_custom_call.1} parent=11 // pred_check
          %p241 = pneg %p128
        $region26: #{tpu_custom_call.1} parent=11 // pred_check_branch
          %243 = sbr.rel (%p241) target = $region28
        $region27: #{tpu_custom_call.1} parent=11 // pred_region
          _
        $region28: #{tpu_custom_call.1} parent=11 // pred_fallthru
          _
        // Predicated region
        $region29: #{tpu_custom_call.1} parent=11 // pred_check
          %p244 = pneg %p149
        $region30: #{tpu_custom_call.1} parent=11 // pred_check_branch
          %246 = sbr.rel (%p244) target = $region32
        $region31: #{tpu_custom_call.1} parent=11 // pred_region
          _
        $region32: #{tpu_custom_call.1} parent=11 // pred_fallthru
          _
        // Predicated region
        $region33: #{tpu_custom_call.1} parent=11 // pred_check
          %p247 = pneg %p170
        $region34: #{tpu_custom_call.1} parent=11 // pred_check_branch
          %249 = sbr.rel (%p247) target = $region36
        $region35: #{tpu_custom_call.1} parent=11 // pred_region
          _
        $region36: #{tpu_custom_call.1} parent=11 // pred_fallthru
          _
        // Predicated region
        $region37: #{tpu_custom_call.1} parent=11 // pred_check
          %p250 = pneg %p191
        $region38: #{tpu_custom_call.1} parent=11 // pred_check_branch
          %252 = sbr.rel (%p250) target = $region40
        $region39: #{tpu_custom_call.1} parent=11 // pred_region
          %s254 = ssub.s32 16, 16
          %255 = vsyncadd [#allocation4], %s254
          %s257 = sshll.u32 %s7, 4
          %s258 = int_to_ptr.vmem [resolvable:$true] %s257
          %260 = dma.vmem_to_smem %s258, 16, [#allocation2], [#allocation4]
        $region40: #{tpu_custom_call.1} parent=11 // pred_fallthru
          _
      $region12: #{tpu_custom_call.1} parent=5 // pred_fallthru
        _
      %p261 = scmp.lt.s32.totalorder %s18, 2
      // Predicated region
      $region41: #{tpu_custom_call.1} parent=5 // pred_check
        %p262 = pneg %p261
      $region42: #{tpu_custom_call.1} parent=5 // pred_check_branch
        %264 = sbr.rel (%p262) target = $region44
      $region43: #{tpu_custom_call.1} parent=5 // pred_region
        // Predicated region
        $region45: #{tpu_custom_call.1} parent=43 // pred_check
          %p265 = pneg %p38
        $region46: #{tpu_custom_call.1} parent=43 // pred_check_branch
          %267 = sbr.rel (%p265) target = $region48
        $region47: #{tpu_custom_call.1} parent=43 // pred_region
          %p268 = scmp.lt.s32.totalorder %s18, 1
          %s269 = scalar_select %p268, %s18, 1
          %s270 = smul.addr %s269, 4
          %s271 = scalar_lea.vmem %s0, %s270
        $region48: #{tpu_custom_call.1} parent=43 // pred_fallthru
          _
      $region44: #{tpu_custom_call.1} parent=5 // pred_fallthru
        _
      %p272 = scmp.le.s32.totalorder 1, %s18
      %p273 = scmp.lt.s32.totalorder %s18, 3
      %p274 = pnand %p272, %p273
      %p275 = pneg %p274
      // Predicated region
      $region49: #{tpu_custom_call.1} parent=5 // pred_check
        _
      $region50: #{tpu_custom_call.1} parent=5 // pred_check_branch
        %277 = sbr.rel (%p274) target = $region52
      $region51: #{tpu_custom_call.1} parent=5 // pred_region
        %s278 = ssub.s32 %s18, 1
        // Predicated region
        $region53: #{tpu_custom_call.1} parent=51 // pred_check
          %p279 = pneg %p191
        $region54: #{tpu_custom_call.1} parent=51 // pred_check_branch
          %281 = sbr.rel (%p279) target = $region56
        $region55: #{tpu_custom_call.1} parent=51 // pred_region
          %282 = dma.done [#allocation4], 16
        $region56: #{tpu_custom_call.1} parent=51 // pred_fallthru
          _
        %283 = sfence
        %p284 = scmp.lt.s32.totalorder %s23, 1
        %s285 = scalar_select %p284, %s23, 1
        %s286 = smul.addr %s285, 4
        %s287 = scalar_lea.vmem %s0, %s286
        %p288 = pneg %p44
        %p289 = pneg %p41
        %p290 = pneg %p65
        %p291 = pneg %p62
        %p292 = pneg %p86
        %p293 = pneg %p83
        %p294 = pneg %p107
        %p295 = pneg %p104
        %p296 = pneg %p128
        %p297 = pneg %p125
        %p298 = pneg %p149
        %p299 = pneg %p146
        %p300 = pneg %p170
        %p301 = pneg %p167
        %p302 = pneg %p191
        %p303 = pneg %p188
        %p304 = pneg %p217
        %p305 = pneg %p214
        %s306 = sand.u32 %s204, 1
        %s307 = scalar_lea.sflag [#allocation3], %s306
        %s308 = sand.u32 %s204, 1
        %s309 = smul.addr %s308, 4
        %s310 = scalar_lea.vmem [#allocation5], %s309
        %p311 = scmp.lt.s32.totalorder %s23, 1
        %s312 = scalar_select %p311, %s23, 1
        %s313 = smul.addr %s312, 4
        %s314 = scalar_lea.vmem %s0, %s313
        %s316 = sld [smem:[#allocation2]]
        %s317 = sld [smem:[#allocation2 + $0x1]]
        %s318 = sld [smem:[#allocation2 + $0x2]]
        %v319 = vld [vmem:[%s314] sm:$0xf]
        %vm320 = vcmask 125952
        %v321 = vsel %vm320, %v319, 0.0
        %322 = vadd.xlane.f32.xlu0 %v321
        %v323 = vpop.xlane.xlu0 %322
        %v324 = vrcp.pop 16.0
        %v325 = vmul.f32 %v323, %v324
        %vm326 = vcmp.gt.f32.partialorder %v319, %v325
        %v327 = vstv %s317
        %v328 = vmul.f32 %v319, %v327
        %v329 = vstv %s316
        %v330 = vmul.f32 %v319, %v329
        %v331 = vsel %vm326, %v328, %v330
        %v332 = vpack.c.bf16 %v331, %v331
        %v333 = vld [vmem:[%s1] sm:$0xf]
        %v334 = vld [vmem:[%s1 + $0x4] sm:$0xf]
        %v337 = vunpack.c.l.b16 %v333
        %v338 = vunpack.c.l.b16 %v334
        %v339 = vpack.c.b16 %v338, %v337
        %vm341 = vcmask 130048
        %v343 = vsel %vm341, %v332, 0
        %345 = vmatprep.subr.bf16.mxu0 0
        %346 = vmatpush1.bf16.msra.mxu0 0
        %347 = vmatprep.subr.bf16.mxu0 0
        %348 = vmatpush1.bf16.msra.mxu0 0
        %349 = vmatprep.subr.bf16.mxu0 0
        %350 = vmatpush1.bf16.msra.mxu0 0
        %351 = vmatprep.subr.bf16.mxu0 0
        %352 = vmatpush1.bf16.msra.mxu0 0
        %353 = vmatprep.subr.bf16.mxu0 0
        %354 = vmatpush1.bf16.msra.mxu0 0
        %355 = vmatprep.subr.bf16.mxu0 0
        %356 = vmatpush1.bf16.msra.mxu0 0
        %357 = vmatprep.subr.bf16.mxu0 0
        %358 = vmatpush1.bf16.msra.mxu0 0
        %359 = vmatprep.subr.bf16.mxu0 0
        %360 = vmatpush1.bf16.msra.mxu0 %v339
        %361 = vmatprep.subr.bf16.mxu0 0
        %362 = vmatpush2.bf16.msra.mxu0 0
        %363 = vmatprep.subr.bf16.mxu0 0
        %364 = vmatpush2.bf16.msra.mxu0 0
        %365 = vmatprep.subr.bf16.mxu0 0
        %366 = vmatpush2.bf16.msra.mxu0 0
        %367 = vmatprep.subr.bf16.mxu0 0
        %368 = vmatpush2.bf16.msra.mxu0 0
        %369 = vmatprep.subr.bf16.mxu0 0
        %370 = vmatpush2.bf16.msra.mxu0 0
        %371 = vmatprep.subr.bf16.mxu0 0
        %372 = vmatpush2.bf16.msra.mxu0 0
        %373 = vmatprep.subr.bf16.mxu0 0
        %374 = vmatpush2.bf16.msra.mxu0 0
        %375 = vmatprep.subr.bf16.mxu0 0
        %376 = vmatpush2.bf16.msra.mxu0 0
        %377 = vmatprep.mubr.bf16.mxu0 0
        %378 = vmatmul.mubr.bf16.gmra.mxu0 %v343
        %v379 = vpop.f32.mrf.mxu0
        %v380 = vadd.f32 0.0, %v379
        %v381 = vpop.f32.mrf.mxu0
        %v382 = vpop.f32.mrf.mxu0
        %v383 = vpop.f32.mrf.mxu0
        %384 = vdwg.mxu0
        %v385 = vld [vmem:[%s2] sm:$0xf]
        %v386 = vld [vmem:[%s2 + $0x4] sm:$0xf]
        %v389 = vunpack.c.l.b16 %v385
        %v390 = vunpack.c.l.b16 %v386
        %v391 = vpack.c.b16 %v390, %v389
        %393 = vmatprep.subr.bf16.mxu0 0
        %394 = vmatpush1.bf16.msra.mxu0 0
        %395 = vmatprep.subr.bf16.mxu0 0
        %396 = vmatpush1.bf16.msra.mxu0 0
        %397 = vmatprep.subr.bf16.mxu0 0
        %398 = vmatpush1.bf16.msra.mxu0 0
        %399 = vmatprep.subr.bf16.mxu0 0
        %400 = vmatpush1.bf16.msra.mxu0 0
        %401 = vmatprep.subr.bf16.mxu0 0
        %402 = vmatpush1.bf16.msra.mxu0 0
        %403 = vmatprep.subr.bf16.mxu0 0
        %404 = vmatpush1.bf16.msra.mxu0 0
        %405 = vmatprep.subr.bf16.mxu0 0
        %406 = vmatpush1.bf16.msra.mxu0 0
        %407 = vmatprep.subr.bf16.mxu0 0
        %408 = vmatpush1.bf16.msra.mxu0 %v391
        %409 = vmatprep.subr.bf16.mxu0 0
        %410 = vmatpush2.bf16.msra.mxu0 0
        %411 = vmatprep.subr.bf16.mxu0 0
        %412 = vmatpush2.bf16.msra.mxu0 0
        %413 = vmatprep.subr.bf16.mxu0 0
        %414 = vmatpush2.bf16.msra.mxu0 0
        %415 = vmatprep.subr.bf16.mxu0 0
        %416 = vmatpush2.bf16.msra.mxu0 0
        %417 = vmatprep.subr.bf16.mxu0 0
        %418 = vmatpush2.bf16.msra.mxu0 0
        %419 = vmatprep.subr.bf16.mxu0 0
        %420 = vmatpush2.bf16.msra.mxu0 0
        %421 = vmatprep.subr.bf16.mxu0 0
        %422 = vmatpush2.bf16.msra.mxu0 0
        %423 = vmatprep.subr.bf16.mxu0 0
        %424 = vmatpush2.bf16.msra.mxu0 0
        %425 = vmatprep.mubr.bf16.mxu0 0
        %426 = vmatmul.mubr.bf16.gmra.mxu0 %v343
        %v427 = vpop.f32.mrf.mxu0
        %v428 = vadd.f32 0.0, %v427
        %v429 = vpop.f32.mrf.mxu0
        %v430 = vpop.f32.mrf.mxu0
        %v431 = vpop.f32.mrf.mxu0
        %432 = vdwg.mxu0
        %v433 = vld [vmem:[%s5] sm:$0xf]
        %435 = vset.pattern.permute.xlu0 0
        %436 = vperm.xlu0 %435, %v433
        %v437 = vpop.permute.xlu0 %436
        %v439 = vmul.f32 %v380, %v437
        %440 = vset.pattern.permute.xlu0 1
        %441 = vperm.xlu0 %440, %v433
        %v442 = vpop.permute.xlu0 %441
        %v444 = vmul.f32 %v428, %v442
        %v445 = vsub.f32 %v439, %v444
        %v446 = vmul.f32 %v380, %v442
        %v447 = vmul.f32 %v428, %v437
        %v448 = vadd.f32 %v446, %v447
        %v449 = vmul.f32 %v380, %v380
        %v450 = vmul.f32 %v428, %v428
        %v451 = vadd.f32 %v449, %v450
        %vm452 = vcmask 60416
        %v453 = vsel %vm452, %v451, 0.0
        %v454 = vrot.slane %v453, 4
        %v455 = vadd.f32 %v453, %v454
        %v456 = vrot.slane %v455, 2
        %v457 = vadd.f32 %v455, %v456
        %v458 = vrot.slane %v457, 1
        %v459 = vadd.f32 %v457, %v458
        %vm460 = vcmask 64512
        %v461 = vsel %vm460, %v459, -inf
        %462 = vmax.xlane.f32.xlu0 %v461
        %v463 = vpop.xlane.xlu0 %462
        %s464 = vtos %v463
        loop: start=0, step=1, limit=48
        $region57: #{tpu_custom_call.1} parent=51 // loop_pre_header
          _
        $region58: #{tpu_custom_call.1} parent=51 // loop_header
          %s466 = sphi 0, %s470
          %p467 = scmp.ge.s32.totalorder %s466, 48
          %s471 = sphi -1.0, %s491
          %s472 = sphi %s464, %s492
        $region59: #{tpu_custom_call.1} parent=51 // loop_header_branch
          %469 = sbr.rel (%p467) target = $region63
        $region60: #{tpu_custom_call.1} parent=51 // loop_body
          %s473 = sadd.f32 %s471, %s472
          %s474 = smul.f32 %s473, 0.5
          %v475 = vstv %s474
          %vm476 = vcmp.le.f32.partialorder %v459, %v475
          %v477 = vsel %vm476, 1, 0
          %v478 = vcvt.s32.f32 %v477
          %vm479 = vcmask 57344
          %v480 = vsel %vm479, %v478, 0.0
          %481 = vadd.xlane.f32.xlu0 %v480
          %v482 = vpop.xlane.xlu0 %481
          %v483 = vrot.slane %v482, 4
          %v484 = vadd.f32 %v482, %v483
          %v485 = vrot.slane %v484, 2
          %v486 = vadd.f32 %v484, %v485
          %v487 = vrot.slane %v486, 1
          %v488 = vadd.f32 %v486, %v487
          %s489 = vtos %v488
          %p490 = scmp.ge.f32.partialorder %s489, 4.0
          %s491 = scalar_select %p490, %s471, %s474
          %s492 = scalar_select %p490, %s474, %s472
        $region61: #{tpu_custom_call.1} parent=51 // loop_footer
          %s470 = sadd.s32 1, %s466
        $region62: #{tpu_custom_call.1} parent=51 // loop_footer_branch
          %465 = sbr.rel target = $region58
        $region63: #{tpu_custom_call.1} parent=51 // loop_exit
          _
        %v493 = vstv %s471
        %vm494 = vcmp.gt.f32.partialorder %v459, %v493
        %v495 = vsel %vm494, %v459, 3.4e+38
        %v496 = vsel %vm460, %v495, inf
        %497 = vmin.xlane.f32.xlu0 %v496
        %v498 = vpop.xlane.xlu0 %497
        %s499 = vtos %v498
        %s500 = sadd.f32 %s499, 1e-06
        %v501 = vstv %s500
        %v502 = vrcp.pop %v501
        %v503 = vmul.f32 %v459, %v502
        %v504 = vstv %s318
        %vm505 = vcmp.gt.f32.partialorder %v503, %v504
        %v506 = vsel %vm505, 1, 0
        %v507 = vcvt.s32.f32 %v506
        %v508 = vld [vmem:[%s6] sm:$0xf]
        %v509 = vmul.f32 %v380, %v507
        %v510 = vmul.f32 %v428, %v507
        %512 = vset.pattern.permute.xlu0 0
        %513 = vperm.xlu0 %512, %v508
        %v514 = vpop.permute.xlu0 %513
        %v516 = vmul.f32 %v509, %v514
        %517 = vset.pattern.permute.xlu0 1
        %518 = vperm.xlu0 %517, %v508
        %v519 = vpop.permute.xlu0 %518
        %v521 = vmul.f32 %v510, %v519
        %v522 = vsub.f32 %v516, %v521
        %v523 = vadd.f32 %v445, %v522
        %v524 = vmul.f32 %v509, %v519
        %v525 = vmul.f32 %v510, %v514
        %v526 = vadd.f32 %v524, %v525
        %v527 = vadd.f32 %v448, %v526
        %v528 = vpack.c.bf16 %v523, %v523
        %v529 = vld [vmem:[%s3] sm:$0xf]
        %v530 = vpack.c.bf16 %v527, %v527
        %v531 = vld [vmem:[%s4] sm:$0xf]
        %v533 = vsel %vm460, %v530, 0
        %vm535 = vcmask 1043456
        %v537 = vsel %vm535, %v531, 0
        %539 = vmatprep.subr.bf16.mxu0 0
        %540 = vmatpush1.bf16.msra.mxu0 0
        %541 = vmatprep.subr.bf16.mxu0 0
        %542 = vmatpush1.bf16.msra.mxu0 0
        %543 = vmatprep.subr.bf16.mxu0 0
        %544 = vmatpush1.bf16.msra.mxu0 0
        %545 = vmatprep.subr.bf16.mxu0 0
        %546 = vmatpush1.bf16.msra.mxu0 0
        %547 = vmatprep.subr.bf16.mxu0 0
        %548 = vmatpush1.bf16.msra.mxu0 0
        %549 = vmatprep.subr.bf16.mxu0 0
        %550 = vmatpush1.bf16.msra.mxu0 0
        %551 = vmatprep.subr.bf16.mxu0 0
        %552 = vmatpush1.bf16.msra.mxu0 0
        %553 = vmatprep.subr.bf16.mxu0 0
        %554 = vmatpush1.bf16.msra.mxu0 %v537
        %555 = vmatprep.subr.bf16.mxu0 0
        %556 = vmatpush2.bf16.msra.mxu0 0
        %557 = vmatprep.subr.bf16.mxu0 0
        %558 = vmatpush2.bf16.msra.mxu0 0
        %559 = vmatprep.subr.bf16.mxu0 0
        %560 = vmatpush2.bf16.msra.mxu0 0
        %561 = vmatprep.subr.bf16.mxu0 0
        %562 = vmatpush2.bf16.msra.mxu0 0
        %563 = vmatprep.subr.bf16.mxu0 0
        %564 = vmatpush2.bf16.msra.mxu0 0
        %565 = vmatprep.subr.bf16.mxu0 0
        %566 = vmatpush2.bf16.msra.mxu0 0
        %567 = vmatprep.subr.bf16.mxu0 0
        %568 = vmatpush2.bf16.msra.mxu0 0
        %569 = vmatprep.subr.bf16.mxu0 0
        %570 = vmatpush2.bf16.msra.mxu0 0
        %571 = vmatprep.mubr.bf16.mxu0 0
        %572 = vmatmul.mubr.bf16.gmra.mxu0 %v533
        %v573 = vpop.f32.mrf.mxu0
        %v574 = vadd.f32 0.0, %v573
        %v575 = vpop.f32.mrf.mxu0
        %v576 = vpop.f32.mrf.mxu0
        %v577 = vpop.f32.mrf.mxu0
        %578 = vdwg.mxu0
        %v580 = vsel %vm460, %v528, 0
        %v583 = vsel %vm535, %v529, 0
        %585 = vmatprep.subr.bf16.mxu0 0
        %586 = vmatpush1.bf16.msra.mxu0 0
        %587 = vmatprep.subr.bf16.mxu0 0
        %588 = vmatpush1.bf16.msra.mxu0 0
        %589 = vmatprep.subr.bf16.mxu0 0
        %590 = vmatpush1.bf16.msra.mxu0 0
        %591 = vmatprep.subr.bf16.mxu0 0
        %592 = vmatpush1.bf16.msra.mxu0 0
        %593 = vmatprep.subr.bf16.mxu0 0
        %594 = vmatpush1.bf16.msra.mxu0 0
        %595 = vmatprep.subr.bf16.mxu0 0
        %596 = vmatpush1.bf16.msra.mxu0 0
        %597 = vmatprep.subr.bf16.mxu0 0
        %598 = vmatpush1.bf16.msra.mxu0 0
        %599 = vmatprep.subr.bf16.mxu0 0
        %600 = vmatpush1.bf16.msra.mxu0 %v583
        %601 = vmatprep.subr.bf16.mxu0 0
        %602 = vmatpush2.bf16.msra.mxu0 0
        %603 = vmatprep.subr.bf16.mxu0 0
        %604 = vmatpush2.bf16.msra.mxu0 0
        %605 = vmatprep.subr.bf16.mxu0 0
        %606 = vmatpush2.bf16.msra.mxu0 0
        %607 = vmatprep.subr.bf16.mxu0 0
        %608 = vmatpush2.bf16.msra.mxu0 0
        %609 = vmatprep.subr.bf16.mxu0 0
        %610 = vmatpush2.bf16.msra.mxu0 0
        %611 = vmatprep.subr.bf16.mxu0 0
        %612 = vmatpush2.bf16.msra.mxu0 0
        %613 = vmatprep.subr.bf16.mxu0 0
        %614 = vmatpush2.bf16.msra.mxu0 0
        %615 = vmatprep.subr.bf16.mxu0 0
        %616 = vmatpush2.bf16.msra.mxu0 0
        %617 = vmatprep.mubr.bf16.mxu0 0
        %618 = vmatmul.mubr.bf16.gmra.mxu0 %v580
        %v619 = vpop.f32.mrf.mxu0
        %v620 = vadd.f32 %v574, %v619
        %v621 = vpop.f32.mrf.mxu0
        %v622 = vpop.f32.mrf.mxu0
        %v623 = vpop.f32.mrf.mxu0
        %624 = vdwg.mxu0
        %625 = vst.msk [vmem:[%s310] sm:$0xf] %vm320, %v620
        %s626 = sand.u32 %s204, 1
        %s627 = scalar_lea.sflag [#allocation3], %s626
        %s628 = sand.u32 %s204, 1
        %s629 = smul.addr %s628, 4
        %s630 = scalar_lea.vmem [#allocation5], %s629
        // Predicated region
        $region64: #{tpu_custom_call.1} parent=51 // pred_check
          %p631 = pneg %p214
        $region65: #{tpu_custom_call.1} parent=51 // pred_check_branch
          %633 = sbr.rel (%p631) target = $region67
        $region66: #{tpu_custom_call.1} parent=51 // pred_region
          %s635 = ssub.s32 64, 64
          %636 = vsyncadd %s627, %s635
          %s637 = smul.addr %s23, 64
          %s638 = scalar_lea.hbm %s8, %s637
          %s640 = sshll.u32 %s630, 4
          %s641 = int_to_ptr.vmem [resolvable:$true] %s640
          %643 = dma.vmem_to_hbm [thread:$0]  %s641, 64, %s638, %s627
        $region67: #{tpu_custom_call.1} parent=51 // pred_fallthru
          _
      $region52: #{tpu_custom_call.1} parent=5 // pred_fallthru
        _
      %p644 = scmp.le.s32.totalorder 2, %s18
      // Predicated region
      $region68: #{tpu_custom_call.1} parent=5 // pred_check
        %p645 = pneg %p644
      $region69: #{tpu_custom_call.1} parent=5 // pred_check_branch
        %647 = sbr.rel (%p645) target = $region71
      $region70: #{tpu_custom_call.1} parent=5 // pred_region
        %s648 = ssub.s32 %s18, 2
        // Predicated region
        $region72: #{tpu_custom_call.1} parent=70 // pred_check
          %p649 = pneg %p220
        $region73: #{tpu_custom_call.1} parent=70 // pred_check_branch
          %651 = sbr.rel (%p649) target = $region75
        $region74: #{tpu_custom_call.1} parent=70 // pred_region
          %s652 = sand.u32 %s205, 1
          %s653 = scalar_lea.sflag [#allocation3], %s652
          %s654 = sand.u32 %s205, 1
          %s655 = smul.addr %s654, 4
          %s656 = scalar_lea.vmem [#allocation5], %s655
          %657 = dma.done %s653, 64
        $region75: #{tpu_custom_call.1} parent=70 // pred_fallthru
          _
      $region71: #{tpu_custom_call.1} parent=5 // pred_fallthru
        _
    $region6: #{tpu_custom_call.1} parent=1 // loop_footer
      %s22 = sadd.s32 1, %s18
    $region7: #{tpu_custom_call.1} parent=1 // loop_footer_branch
      %17 = sbr.rel target = $region3
    $region8: #{tpu_custom_call.1} parent=1 // loop_exit
      _
    %658 = vsyncpa [#allocation3], 1
    %s659 = scalar_lea.sflag [#allocation3], 1
    %660 = vsyncpa %s659, 1
    %661 = vsyncpa [#allocation4], 1
    %s662 = scalar_lea.sflag [#allocation4], 1
    %663 = vsyncpa %s662, 1

</llo_original>
